<compile_context>
chip_gen: v7x
topology: tpu7x:2x2x1
jax: 0.10.0
libtpu: 0.0.40
codegen_flags: <defaults>
</compile_context>

<pallas_src>
import functools

import jax
import jax.numpy as jnp
from jax.experimental import pallas as pl
from jax.experimental.pallas import tpu as pltpu


def _round_up(x, m):
    return ((x + m - 1) // m) * m


def _largest_aligned_divisor(total, target, align=8):
    """Largest divisor of `total` that is <= target and a multiple of `align`."""
    t = min(target, total)
    for cand in range(t, 0, -1):
        if total % cand == 0 and cand % align == 0:
            return cand
    return total  # full-array block (always a legal block shape)


# --------------------------------------------------------------------------------------
# Pass 1: in-VMEM gather (table resident in VMEM) + per-tile partial sum / sum-of-squares.
# --------------------------------------------------------------------------------------
def _gather_stats_kernel(ids_ref, tbl_ref, x_ref, stats_ref, *, tn, vocab, n_tokens):
    i = pl.program_id(0)
    base = i * tn

    # In-VMEM gather: one dynamic-sublane row load from the resident table and one static
    # row store straight into the output block per token (no scratch, no per-row DMA).
    # Static Python unroll: `tn` is kept small/moderate (default 128).
    for t in range(tn):
        # torch.nn.Embedding would raise on an out-of-range id; clamp instead.
        idx = jnp.clip(ids_ref[base + t], 0, vocab - 1)
        x_ref[pl.ds(t, 1), :] = tbl_ref[pl.ds(idx, 1), :]

    x = x_ref[...]                                            # (tn, H) read back from VMEM

    # Mask rows past the true token count (padding) out of the statistics.
    row = jax.lax.broadcasted_iota(jnp.int32, (tn, 1), 0)
    valid = (base + row) < n_tokens
    xm = jnp.where(valid, x, 0.0)

    ps = jnp.sum(xm, axis=0, keepdims=True)                   # (1, H) per-lane sum
    pss = jnp.sum(xm * xm, axis=0, keepdims=True)             # (1, H) per-lane sum of squares
    stats_ref[0] = jnp.concatenate([ps, pss], axis=0)         # (2, H) per-tile partials


# --------------------------------------------------------------------------------------
# Pass 2: lane-dense fused whitening + clip.  mean/scale are precomputed scalars in SMEM.
# --------------------------------------------------------------------------------------
def _normalize_kernel(params_ref, x_ref, o_ref):
    mean = params_ref[0]
    scale = params_ref[1]
    o_ref[...] = jnp.clip((x_ref[...] - mean) * scale + 0.5, 0.0, 1.0)


def text_embedding_forward(ids, emb_table, *, tokens_per_tile=128, rows_per_tile=512):
    """ids: (B, S) int token ids; emb_table: (V, H) float32.  Returns (B, S, H) float32."""
    B, S = ids.shape
    V, H = emb_table.shape
    N = B * S

    ids_flat = ids.reshape(N).astype(jnp.int32)
    emb_table = emb_table.astype(jnp.float32)

    # Token tiling: sublane-aligned tiles, N padded up to a tile multiple (padded ids = 0,
    # masked out of the statistics and sliced off the output).
    tn = _round_up(max(8, min(tokens_per_tile, _round_up(N, 8))), 8)
    n_pad = _round_up(N, tn)
    n_tiles = n_pad // tn
    if n_pad > N:
        ids_flat = jnp.pad(ids_flat, (0, n_pad - N))

    vmem_limit = 40 * 1024 * 1024  # stays under v7x 64 MiB physical; fine on v5e/v6e

    # ---- Pass 1: gather + per-tile partial stats --------------------------------------
    x_pad, partial_stats = pl.pallas_call(
        functools.partial(_gather_stats_kernel, tn=tn, vocab=V, n_tokens=N),
        out_shape=(
            jax.ShapeDtypeStruct((n_pad, H), jnp.float32),          # gathered activations
            jax.ShapeDtypeStruct((n_tiles, 2, H), jnp.float32),     # per-tile (sum, sumsq)
        ),
        grid_spec=pltpu.PrefetchScalarGridSpec(
            num_scalar_prefetch=1,                                  # ids -> SMEM
            grid=(n_tiles,),
            in_specs=[
                # Whole table as one VMEM block; constant block index => DMA'd once,
                # resident for the rest of the grid.
                pl.BlockSpec((V, H), lambda i, ids: (0, 0)),
            ],
            out_specs=(
                pl.BlockSpec((tn, H), lambda i, ids: (i, 0)),
                pl.BlockSpec((1, 2, H), lambda i, ids: (i, 0, 0)),
            ),
        ),
        compiler_params=pltpu.CompilerParams(
            dimension_semantics=("parallel",),                      # independent tiles
            vmem_limit_bytes=vmem_limit),
        cost_estimate=pl.CostEstimate(
            flops=4 * n_pad * H, transcendentals=0,
            bytes_accessed=V * H * 4 + n_pad * 4 + n_pad * H * 4 + n_tiles * 2 * H * 4),
    )(ids_flat, emb_table)

    # ---- Finalize global mean / unbiased var / scale in the wrapper (tiny) ------------
    s = jnp.sum(partial_stats[:, 0, :])
    ss = jnp.sum(partial_stats[:, 1, :])
    n_elems = N * H
    mean = s / n_elems
    # Unbiased variance (torch.var default): sum((x-mean)^2)/(n-1) == (ss - s*mean)/(n-1).
    # NOTE: uncentered form; fine for ~N(0,1) embedding weights (nn.Embedding init).
    var = (ss - s * mean) / (n_elems - 1)
    scale = jax.lax.rsqrt(var) * (1.0 / 6.0)
    params = jnp.stack([mean, scale]).astype(jnp.float32)           # (2,) -> SMEM

    # ---- Pass 2: lane-dense whitening + clip ------------------------------------------
    # The transform is elementwise with global stats, so reinterpret the activations
    # row-major as (rows, 128) to get full-width vregs and unmasked stores.
    if (n_pad * H) % 128 == 0:
        rows, lanes = (n_pad * H) // 128, 128
    else:
        rows, lanes = n_pad, H
    x2d = x_pad.reshape(rows, lanes)
    tr = _largest_aligned_divisor(rows, rows_per_tile, 8)

    out2d = pl.pallas_call(
        _normalize_kernel,
        out_shape=jax.ShapeDtypeStruct((rows, lanes), jnp.float32),
        grid=(rows // tr,),
        in_specs=[
            pl.BlockSpec(memory_space=pltpu.MemorySpace.SMEM),      # (2,) mean/scale scalars
            pl.BlockSpec((tr, lanes), lambda i: (i, 0)),
        ],
        out_specs=pl.BlockSpec((tr, lanes), lambda i: (i, 0)),
        compiler_params=pltpu.CompilerParams(
            dimension_semantics=("parallel",),
            vmem_limit_bytes=vmem_limit),
        cost_estimate=pl.CostEstimate(
            flops=4 * rows * lanes, transcendentals=0,
            bytes_accessed=2 * rows * lanes * 4 + 8),
    )(params, x2d)

    return out2d.reshape(n_pad, H)[:N].reshape(B, S, H)


if __name__ == "__main__":
    # Small deterministic shapes consistent with the module:
    # vocab (len(word2id)) = 64, hidden_dim = 32, batch = 2, seq = 8.
    V, H = 64, 32
    B, S = 2, 8

    key = jax.random.PRNGKey(0)
    k_emb, k_ids = jax.random.split(key)

    emb_table = jax.random.normal(k_emb, (V, H), dtype=jnp.float32)  # nn.Embedding init N(0,1)
    ids = jax.random.randint(k_ids, (B, S), 0, V, dtype=jnp.int32)

    # tokens_per_tile=8 -> pass-1 grid of 2 tiles, exercising the per-tile partial stats
    # path, the padding-free case, and the lane-dense pass-2 path.
    out = text_embedding_forward(ids, emb_table, tokens_per_tile=8)
    out = jax.block_until_ready(out)

    # Pure-JAX reference of the same math.
    x_ref = emb_table[ids]                                      # (B, S, H)
    m = jnp.mean(x_ref)
    v = jnp.sum((x_ref - m) ** 2) / (x_ref.size - 1)            # unbiased (torch.var default)
    ref = jnp.clip((x_ref - m) / 6.0 / jnp.sqrt(v) + 0.5, 0.0, 1.0)

    assert out.shape == (B, S, H)
    assert jnp.allclose(out, ref, atol=1e-5, rtol=1e-5), float(jnp.max(jnp.abs(out - ref)))

    print("KERNEL_OK")
</pallas_src>

<mosaic_0001>
module attributes {stable_mosaic.version = 11 : i64} {
  func.func @_gather_stats_kernel(%arg0: i32, %arg1: memref<16xi32, #tpu.memory_space<smem>>, %arg2: memref<64x32xf32, #tpu.memory_space<vmem>>, %arg3: memref<8x32xf32, #tpu.memory_space<vmem>>, %arg4: memref<1x2x32xf32, #tpu.memory_space<vmem>>) attributes {dimension_semantics = [#tpu.dimension_semantics<parallel>], iteration_bounds = array<i64: 2>, scalar_prefetch = 1 : i64, scratch_operands = 0 : i64, tpu.core_type = #tpu.core_type<tc>, window_params = [{pipeline_mode = #tpu.pipeline_mode<synchronous>, transform_indices = @transform_0, window_bounds = array<i64: 64, 32>}, {transform_indices = @transform_1, window_bounds = array<i64: 8, 32>}, {transform_indices = @transform_2, window_bounds = array<i64: 1, 2, 32>}]} {
    %c8_i32 = arith.constant 8 : i32
    %0 = arith.muli %arg0, %c8_i32 : i32
    %c0_i32 = arith.constant 0 : i32
    %1 = arith.addi %0, %c0_i32 : i32
    %2 = arith.index_cast %1 : i32 to index
    %3 = memref.load %arg1[%2] : memref<16xi32, #tpu.memory_space<smem>>
    %c0_i32_0 = arith.constant 0 : i32
    %c63_i32 = arith.constant 63 : i32
    %4 = arith.maxsi %c0_i32_0, %3 : i32
    %5 = arith.minsi %c63_i32, %4 : i32
    %6 = arith.index_cast %5 : i32 to index
    %c0 = arith.constant 0 : index
    %7 = vector.load %arg2[%6, %c0] : memref<64x32xf32, #tpu.memory_space<vmem>>, vector<1x32xf32>
    %c0_1 = arith.constant 0 : index
    %c0_2 = arith.constant 0 : index
    %8 = vector.load %arg3[%c0_1, %c0_2] : memref<8x32xf32, #tpu.memory_space<vmem>>, vector<1x32xf32>
    tpu.vector_store %arg3[%c0_1, %c0_2], %7 {strides = array<i32>} : memref<8x32xf32, #tpu.memory_space<vmem>>, vector<1x32xf32>,
    %c1_i32 = arith.constant 1 : i32
    %9 = arith.addi %0, %c1_i32 : i32
    %10 = arith.index_cast %9 : i32 to index
    %11 = memref.load %arg1[%10] : memref<16xi32, #tpu.memory_space<smem>>
    %c0_i32_3 = arith.constant 0 : i32
    %c63_i32_4 = arith.constant 63 : i32
    %12 = arith.maxsi %c0_i32_3, %11 : i32
    %13 = arith.minsi %c63_i32_4, %12 : i32
    %14 = arith.index_cast %13 : i32 to index
    %c0_5 = arith.constant 0 : index
    %15 = vector.load %arg2[%14, %c0_5] : memref<64x32xf32, #tpu.memory_space<vmem>>, vector<1x32xf32>
    %c1 = arith.constant 1 : index
    %c0_6 = arith.constant 0 : index
    %16 = vector.load %arg3[%c1, %c0_6] : memref<8x32xf32, #tpu.memory_space<vmem>>, vector<1x32xf32>
    tpu.vector_store %arg3[%c1, %c0_6], %15 {strides = array<i32>} : memref<8x32xf32, #tpu.memory_space<vmem>>, vector<1x32xf32>,
    %c2_i32 = arith.constant 2 : i32
    %17 = arith.addi %0, %c2_i32 : i32
    %18 = arith.index_cast %17 : i32 to index
    %19 = memref.load %arg1[%18] : memref<16xi32, #tpu.memory_space<smem>>
    %c0_i32_7 = arith.constant 0 : i32
    %c63_i32_8 = arith.constant 63 : i32
    %20 = arith.maxsi %c0_i32_7, %19 : i32
    %21 = arith.minsi %c63_i32_8, %20 : i32
    %22 = arith.index_cast %21 : i32 to index
    %c0_9 = arith.constant 0 : index
    %23 = vector.load %arg2[%22, %c0_9] : memref<64x32xf32, #tpu.memory_space<vmem>>, vector<1x32xf32>
    %c2 = arith.constant 2 : index
    %c0_10 = arith.constant 0 : index
    %24 = vector.load %arg3[%c2, %c0_10] : memref<8x32xf32, #tpu.memory_space<vmem>>, vector<1x32xf32>
    tpu.vector_store %arg3[%c2, %c0_10], %23 {strides = array<i32>} : memref<8x32xf32, #tpu.memory_space<vmem>>, vector<1x32xf32>,
    %c3_i32 = arith.constant 3 : i32
    %25 = arith.addi %0, %c3_i32 : i32
    %26 = arith.index_cast %25 : i32 to index
    %27 = memref.load %arg1[%26] : memref<16xi32, #tpu.memory_space<smem>>
    %c0_i32_11 = arith.constant 0 : i32
    %c63_i32_12 = arith.constant 63 : i32
    %28 = arith.maxsi %c0_i32_11, %27 : i32
    %29 = arith.minsi %c63_i32_12, %28 : i32
    %30 = arith.index_cast %29 : i32 to index
    %c0_13 = arith.constant 0 : index
    %31 = vector.load %arg2[%30, %c0_13] : memref<64x32xf32, #tpu.memory_space<vmem>>, vector<1x32xf32>
    %c3 = arith.constant 3 : index
    %c0_14 = arith.constant 0 : index
    %32 = vector.load %arg3[%c3, %c0_14] : memref<8x32xf32, #tpu.memory_space<vmem>>, vector<1x32xf32>
    tpu.vector_store %arg3[%c3, %c0_14], %31 {strides = array<i32>} : memref<8x32xf32, #tpu.memory_space<vmem>>, vector<1x32xf32>,
    %c4_i32 = arith.constant 4 : i32
    %33 = arith.addi %0, %c4_i32 : i32
    %34 = arith.index_cast %33 : i32 to index
    %35 = memref.load %arg1[%34] : memref<16xi32, #tpu.memory_space<smem>>
    %c0_i32_15 = arith.constant 0 : i32
    %c63_i32_16 = arith.constant 63 : i32
    %36 = arith.maxsi %c0_i32_15, %35 : i32
    %37 = arith.minsi %c63_i32_16, %36 : i32
    %38 = arith.index_cast %37 : i32 to index
    %c0_17 = arith.constant 0 : index
    %39 = vector.load %arg2[%38, %c0_17] : memref<64x32xf32, #tpu.memory_space<vmem>>, vector<1x32xf32>
    %c4 = arith.constant 4 : index
    %c0_18 = arith.constant 0 : index
    %40 = vector.load %arg3[%c4, %c0_18] : memref<8x32xf32, #tpu.memory_space<vmem>>, vector<1x32xf32>
    tpu.vector_store %arg3[%c4, %c0_18], %39 {strides = array<i32>} : memref<8x32xf32, #tpu.memory_space<vmem>>, vector<1x32xf32>,
    %c5_i32 = arith.constant 5 : i32
    %41 = arith.addi %0, %c5_i32 : i32
    %42 = arith.index_cast %41 : i32 to index
    %43 = memref.load %arg1[%42] : memref<16xi32, #tpu.memory_space<smem>>
    %c0_i32_19 = arith.constant 0 : i32
    %c63_i32_20 = arith.constant 63 : i32
    %44 = arith.maxsi %c0_i32_19, %43 : i32
    %45 = arith.minsi %c63_i32_20, %44 : i32
    %46 = arith.index_cast %45 : i32 to index
    %c0_21 = arith.constant 0 : index
    %47 = vector.load %arg2[%46, %c0_21] : memref<64x32xf32, #tpu.memory_space<vmem>>, vector<1x32xf32>
    %c5 = arith.constant 5 : index
    %c0_22 = arith.constant 0 : index
    %48 = vector.load %arg3[%c5, %c0_22] : memref<8x32xf32, #tpu.memory_space<vmem>>, vector<1x32xf32>
    tpu.vector_store %arg3[%c5, %c0_22], %47 {strides = array<i32>} : memref<8x32xf32, #tpu.memory_space<vmem>>, vector<1x32xf32>,
    %c6_i32 = arith.constant 6 : i32
    %49 = arith.addi %0, %c6_i32 : i32
    %50 = arith.index_cast %49 : i32 to index
    %51 = memref.load %arg1[%50] : memref<16xi32, #tpu.memory_space<smem>>
    %c0_i32_23 = arith.constant 0 : i32
    %c63_i32_24 = arith.constant 63 : i32
    %52 = arith.maxsi %c0_i32_23, %51 : i32
    %53 = arith.minsi %c63_i32_24, %52 : i32
    %54 = arith.index_cast %53 : i32 to index
    %c0_25 = arith.constant 0 : index
    %55 = vector.load %arg2[%54, %c0_25] : memref<64x32xf32, #tpu.memory_space<vmem>>, vector<1x32xf32>
    %c6 = arith.constant 6 : index
    %c0_26 = arith.constant 0 : index
    %56 = vector.load %arg3[%c6, %c0_26] : memref<8x32xf32, #tpu.memory_space<vmem>>, vector<1x32xf32>
    tpu.vector_store %arg3[%c6, %c0_26], %55 {strides = array<i32>} : memref<8x32xf32, #tpu.memory_space<vmem>>, vector<1x32xf32>,
    %c7_i32 = arith.constant 7 : i32
    %57 = arith.addi %0, %c7_i32 : i32
    %58 = arith.index_cast %57 : i32 to index
    %59 = memref.load %arg1[%58] : memref<16xi32, #tpu.memory_space<smem>>
    %c0_i32_27 = arith.constant 0 : i32
    %c63_i32_28 = arith.constant 63 : i32
    %60 = arith.maxsi %c0_i32_27, %59 : i32
    %61 = arith.minsi %c63_i32_28, %60 : i32
    %62 = arith.index_cast %61 : i32 to index
    %c0_29 = arith.constant 0 : index
    %63 = vector.load %arg2[%62, %c0_29] : memref<64x32xf32, #tpu.memory_space<vmem>>, vector<1x32xf32>
    %c7 = arith.constant 7 : index
    %c0_30 = arith.constant 0 : index
    %64 = vector.load %arg3[%c7, %c0_30] : memref<8x32xf32, #tpu.memory_space<vmem>>, vector<1x32xf32>
    tpu.vector_store %arg3[%c7, %c0_30], %63 {strides = array<i32>} : memref<8x32xf32, #tpu.memory_space<vmem>>, vector<1x32xf32>,
    %c0_31 = arith.constant 0 : index
    %c0_32 = arith.constant 0 : index
    %65 = vector.load %arg3[%c0_31, %c0_32] : memref<8x32xf32, #tpu.memory_space<vmem>>, vector<8x32xf32>
    %66 = tpu.iota {dimensions = array<i32: 0>} : vector<8x1xi32>
    %67 = vector.broadcast %0 : i32 to vector<8x1xi32>
    %68 = arith.addi %67, %66 : vector<8x1xi32>
    %c16_i32 = arith.constant 16 : i32
    %69 = vector.broadcast %c16_i32 : i32 to vector<8x1xi32>
    %70 = arith.cmpi slt, %68, %69 : vector<8x1xi32>
    %cst = arith.constant 0.000000e+00 : f32
    %71 = vector.shape_cast %70 : vector<8x1xi1> to vector<8x1xi1>
    %72 = vector.broadcast %71 : vector<8x1xi1> to vector<8x32xi1>
    %73 = vector.broadcast %cst : f32 to vector<8x32xf32>
    %74 = arith.select %72, %65, %73 : vector<8x32xi1>, vector<8x32xf32>
    %cst_33 = arith.constant dense<0.000000e+00> : vector<32xf32>
    %75 = vector.multi_reduction <add>, %74, %cst_33 [0] : vector<8x32xf32> to vector<32xf32>
    %76 = vector.shape_cast %75 : vector<32xf32> to vector<1x32xf32>
    %77 = arith.mulf %74, %74 : vector<8x32xf32>
    %cst_34 = arith.constant dense<0.000000e+00> : vector<32xf32>
    %78 = vector.multi_reduction <add>, %77, %cst_34 [0] : vector<8x32xf32> to vector<32xf32>
    %79 = vector.shape_cast %78 : vector<32xf32> to vector<1x32xf32>
    %80 = tpu.concatenate %76, %79 in 0 : vector<1x32xf32>, vector<1x32xf32> -> vector<2x32xf32>
    %c0_35 = arith.constant 0 : index
    %c0_36 = arith.constant 0 : index
    %c0_37 = arith.constant 0 : index
    %81 = vector.load %arg4[%c0_35, %c0_36, %c0_37] : memref<1x2x32xf32, #tpu.memory_space<vmem>>, vector<1x2x32xf32>
    %82 = vector.shape_cast %81 : vector<1x2x32xf32> to vector<2x32xf32>
    %83 = vector.shape_cast %80 : vector<2x32xf32> to vector<1x2x32xf32>
    tpu.vector_store %arg4[%c0_35, %c0_36, %c0_37], %83 {strides = array<i32>} : memref<1x2x32xf32, #tpu.memory_space<vmem>>, vector<1x2x32xf32>,
    return
  }
  func.func @transform_0(%arg0: i32, %arg1: memref<16xi32, #tpu.memory_space<smem>>) -> (i32, i32) {
    %c0_i32 = arith.constant 0 : i32
    %c0_i32_0 = arith.constant 0 : i32
    %c0_i32_1 = arith.constant 0 : i32
    return %c0_i32, %c0_i32_0 : i32, i32
  }
  func.func @transform_1(%arg0: i32, %arg1: memref<16xi32, #tpu.memory_space<smem>>) -> (i32, i32) {
    %c0_i32 = arith.constant 0 : i32
    %c0_i32_0 = arith.constant 0 : i32
    return %arg0, %c0_i32 : i32, i32
  }
  func.func @transform_2(%arg0: i32, %arg1: memref<16xi32, #tpu.memory_space<smem>>) -> (i32, i32, i32) {
    %c0_i32 = arith.constant 0 : i32
    %c0_i32_0 = arith.constant 0 : i32
    %c0_i32_1 = arith.constant 0 : i32
    return %arg0, %c0_i32, %c0_i32_0 : i32, i32, i32
  }
}

</mosaic_0001>

<llo_original>
// kernel: tpu_custom_call.1
$region0: #{tpu_custom_call.1}
  #allocation0 [shape = 'u32[]', space=smem, size = 0x4, offset = 0x4, fixed_abs, tag = 'smem constant byte address 0x4 - core index']
  #allocation1 [shape = 'u32[144,128]{1,0:T(1,128)}', space=vmem, size = 0x12000, scoped, tag = 'internal scratch']
  #allocation2 [shape = 's32[1]{0}', space=sflag, size = 0x4, scoped, tag = 'scoped memory for tpu_custom_call.1']
  #allocation3 [shape = 'u8[512]{0}', space=smem, size = 0x200, scoped, tag = 'prefetched SMEM operand 0']
  %s0 = inlined_call_operand.vmem [shape: s32[16], index: 0, kind: input, shape index: {}]
  %s1 = inlined_call_operand.vmem [shape: f32[64,32], index: 1, kind: input, shape index: {}]
  %s2 = inlined_call_operand.hbm [shape: f32[16,32], index: 2, kind: output, shape index: {0}]
  %s3 = inlined_call_operand.hbm [shape: f32[2,2,32], index: 3, kind: output, shape index: {1}]
  %4 = xla_tuple %s2, %s3
  %s5 = sld [smem:[#allocation0]]
  $region45: #{tpu_custom_call.1} parent=0
    _
  %s7 = ssub.s32 1, %s5
  %s8 = scalar_select 0, %s7, %s5
  %s9 = sshll.u32 %s0, 4
  %s10 = int_to_ptr.vmem [resolvable:$true] %s9
  %12 = dma.vmem_to_smem %s10, 16, [#allocation3], [#allocation2]
  %13 = dma.done [#allocation2], 16
  %14 = sfence
  $region1: #{tpu_custom_call.1} parent=0
    #allocation4 [shape = 'u8[8192]{0}', space=vmem, size = 0x2000, scoped, tag = 'output window, operand 0']
    #allocation5 [shape = 's32[2]{0}', space=sflag, size = 0x8, scoped, tag = 'scoped memory for tpu_custom_call.1']
    #allocation6 [shape = 'u8[2048]{0}', space=vmem, size = 0x800, scoped, tag = 'output window, operand 1']
    #allocation7 [shape = 's32[2]{0}', space=sflag, size = 0x8, scoped, tag = 'scoped memory for tpu_custom_call.1']
    %15 = vsyncpa [#allocation5], 0
    %s16 = scalar_lea.sflag [#allocation5], 1
    %17 = vsyncpa %s16, 0
    %18 = vsyncpa [#allocation7], 0
    %s19 = scalar_lea.sflag [#allocation7], 1
    %20 = vsyncpa %s19, 0
    loop: start=0, step=1, limit=4
    $region2: #{tpu_custom_call.1} parent=1 // loop_pre_header
      _
    $region3: #{tpu_custom_call.1} parent=1 // loop_header
      %s22 = sphi 0, %s26
      %p23 = scmp.ge.s32.totalorder %s22, 4
      %s30 = sphi 0, %s30
      %s32 = sphi 0, %s30
      %s33 = sphi 0, %s32
      %s47 = sphi 0, %s33
      %s53 = sphi 0, %s55
      %s56 = sphi 0, %s53
      %s57 = sphi 0, %s56
      %s73 = sphi 0, %s57
      %s79 = sphi 0, %s81
      %s82 = sphi 0, %s79
      %s83 = sphi 0, %s82
      %s99 = sphi 0, %s83
    $region4: #{tpu_custom_call.1} parent=1 // loop_header_branch
      %25 = sbr.rel (%p23) target = $region8
    $region5: #{tpu_custom_call.1} parent=1 // loop_body
      %s27 = ssub.s32 %s22, 1
      %s28 = ssub.s32 %s22, 2
      %s29 = sadd.s32 %s22, 1
      %s31 = sadd.s32 %s30, 1
      %p34 = scmp.eq.s32.totalorder %s22, 1
      %p35 = scmp.ne.s32.totalorder %s30, %s32
      %p36 = scmp.eq.s32.totalorder %s22, 0
      %p37 = por %p35, %p36
      %p38 = scmp.ne.s32.totalorder %s30, %s32
      %p39 = scmp.eq.s32.totalorder %s27, 1
      %p40 = por %p38, %p39
      %p41 = scmp.ne.s32.totalorder %s32, %s33
      %p42 = scmp.eq.s32.totalorder %s27, 0
      %p43 = por %p41, %p42
      %p44 = scmp.ne.s32.totalorder %s32, %s33
      %p45 = scmp.eq.s32.totalorder %s28, 1
      %p46 = por %p44, %p45
      %p48 = scmp.ne.s32.totalorder %s33, %s47
      %p49 = scmp.eq.s32.totalorder %s28, 0
      %p50 = por %p48, %p49
      %s51 = ssub.s32 %s22, %s29
      %p52 = scmp.eq.s32.totalorder %s51, 0
      %s54 = sadd.s32 %s53, 1
      %s55 = scalar_select %p52, %s53, %s54
      %p58 = pneg %p52
      %p59 = scmp.eq.s32.totalorder %s22, 1
      %p60 = por %p58, %p59
      %p61 = scmp.ne.s32.totalorder %s53, %s56
      %p62 = scmp.eq.s32.totalorder %s22, 0
      %p63 = por %p61, %p62
      %p64 = scmp.ne.s32.totalorder %s53, %s56
      %p65 = scmp.eq.s32.totalorder %s27, 1
      %p66 = por %p64, %p65
      %p67 = scmp.ne.s32.totalorder %s56, %s57
      %p68 = scmp.eq.s32.totalorder %s27, 0
      %p69 = por %p67, %p68
      %p70 = scmp.ne.s32.totalorder %s56, %s57
      %p71 = scmp.eq.s32.totalorder %s28, 1
      %p72 = por %p70, %p71
      %p74 = scmp.ne.s32.totalorder %s57, %s73
      %p75 = scmp.eq.s32.totalorder %s28, 0
      %p76 = por %p74, %p75
      %s77 = ssub.s32 %s22, %s29
      %p78 = scmp.eq.s32.totalorder %s77, 0
      %s80 = sadd.s32 %s79, 1
      %s81 = scalar_select %p78, %s79, %s80
      %p84 = pneg %p78
      %p85 = scmp.eq.s32.totalorder %s22, 1
      %p86 = por %p84, %p85
      %p87 = scmp.ne.s32.totalorder %s79, %s82
      %p88 = scmp.eq.s32.totalorder %s22, 0
      %p89 = por %p87, %p88
      %p90 = scmp.ne.s32.totalorder %s79, %s82
      %p91 = scmp.eq.s32.totalorder %s27, 1
      %p92 = por %p90, %p91
      %p93 = scmp.ne.s32.totalorder %s82, %s83
      %p94 = scmp.eq.s32.totalorder %s27, 0
      %p95 = por %p93, %p94
      %p96 = scmp.ne.s32.totalorder %s82, %s83
      %p97 = scmp.eq.s32.totalorder %s28, 1
      %p98 = por %p96, %p97
      %p100 = scmp.ne.s32.totalorder %s83, %s99
      %p101 = scmp.eq.s32.totalorder %s28, 0
      %p102 = por %p100, %p101
      %p103 = scmp.le.s32.totalorder 1, %s22
      %p104 = scmp.lt.s32.totalorder %s22, 3
      %p105 = pnand %p103, %p104
      %p106 = pneg %p105
      // Predicated region
      $region9: #{tpu_custom_call.1} parent=5 // pred_check
        _
      $region10: #{tpu_custom_call.1} parent=5 // pred_check_branch
        %108 = sbr.rel (%p105) target = $region12
      $region11: #{tpu_custom_call.1} parent=5 // pred_region
        %s109 = ssub.s32 %s22, 1
        // Predicated region
        $region13: #{tpu_custom_call.1} parent=11 // pred_check
          %p110 = pneg %p43
        $region14: #{tpu_custom_call.1} parent=11 // pred_check_branch
          %112 = sbr.rel (%p110) target = $region16
        $region15: #{tpu_custom_call.1} parent=11 // pred_region
          _
        $region16: #{tpu_custom_call.1} parent=11 // pred_fallthru
          _
      $region12: #{tpu_custom_call.1} parent=5 // pred_fallthru
        _
      %p113 = scmp.lt.s32.totalorder %s22, 2
      // Predicated region
      $region17: #{tpu_custom_call.1} parent=5 // pred_check
        %p114 = pneg %p113
      $region18: #{tpu_custom_call.1} parent=5 // pred_check_branch
        %116 = sbr.rel (%p114) target = $region20
      $region19: #{tpu_custom_call.1} parent=5 // pred_region
        _
      $region20: #{tpu_custom_call.1} parent=5 // pred_fallthru
        _
      %p117 = scmp.le.s32.totalorder 1, %s22
      %p118 = scmp.lt.s32.totalorder %s22, 3
      %p119 = pnand %p117, %p118
      %p120 = pneg %p119
      // Predicated region
      $region21: #{tpu_custom_call.1} parent=5 // pred_check
        _
      $region22: #{tpu_custom_call.1} parent=5 // pred_check_branch
        %122 = sbr.rel (%p119) target = $region24
      $region23: #{tpu_custom_call.1} parent=5 // pred_region
        %s123 = ssub.s32 %s22, 1
        %p124 = pneg %p43
        %p125 = pneg %p40
        %p126 = pneg %p69
        %p127 = pneg %p66
        %s128 = sand.u32 %s56, 1
        %s129 = scalar_lea.sflag [#allocation5], %s128
        %s130 = sand.u32 %s56, 1
        %s131 = smul.addr %s130, 8
        %s132 = scalar_lea.vmem [#allocation4], %s131
        %p133 = pneg %p95
        %p134 = pneg %p92
        %s135 = sand.u32 %s82, 1
        %s136 = scalar_lea.sflag [#allocation7], %s135
        %s137 = sand.u32 %s82, 1
        %s138 = smul.addr %s137, 2
        %s139 = scalar_lea.vmem [#allocation6], %s138
        %s140 = smul.u32 %s27, 8
        %s141 = sld [smem:[#allocation3 + %s140]]
        %p142 = scmp.gt.s32.totalorder %s141, 0
        %s143 = scalar_select %p142, %s141, 0
        %p144 = scmp.lt.s32.totalorder %s143, 63
        %s145 = scalar_select %p144, %s143, 63
        %s146 = scalar_lea.vmem %s1, %s145
        %v147 = vld [vmem:[%s146] sm:$0x1]
        %vm148 = vcmask 253952
        %149 = vst.msk [vmem:[%s132] sm:$0x1] %vm148, %v147
        %s150 = sadd.s32 %s140, 1
        %s151 = sld [smem:[#allocation3 + %s150]]
        %p152 = scmp.gt.s32.totalorder %s151, 0
        %s153 = scalar_select %p152, %s151, 0
        %p154 = scmp.lt.s32.totalorder %s153, 63
        %s155 = scalar_select %p154, %s153, 63
        %s156 = scalar_lea.vmem %s1, %s155
        %v157 = vld [vmem:[%s156] sm:$0x1]
        %158 = vst.msk [vmem:[%s132 + $0x1] sm:$0x1] %vm148, %v157
        %s159 = sadd.s32 %s140, 2
        %s160 = sld [smem:[#allocation3 + %s159]]
        %p161 = scmp.gt.s32.totalorder %s160, 0
        %s162 = scalar_select %p161, %s160, 0
        %p163 = scmp.lt.s32.totalorder %s162, 63
        %s164 = scalar_select %p163, %s162, 63
        %s165 = scalar_lea.vmem %s1, %s164
        %v166 = vld [vmem:[%s165] sm:$0x1]
        %167 = vst.msk [vmem:[%s132 + $0x2] sm:$0x1] %vm148, %v166
        %s168 = sadd.s32 %s140, 3
        %s169 = sld [smem:[#allocation3 + %s168]]
        %p170 = scmp.gt.s32.totalorder %s169, 0
        %s171 = scalar_select %p170, %s169, 0
        %p172 = scmp.lt.s32.totalorder %s171, 63
        %s173 = scalar_select %p172, %s171, 63
        %s174 = scalar_lea.vmem %s1, %s173
        %v175 = vld [vmem:[%s174] sm:$0x1]
        %176 = vst.msk [vmem:[%s132 + $0x3] sm:$0x1] %vm148, %v175
        %s177 = sadd.s32 %s140, 4
        %s178 = sld [smem:[#allocation3 + %s177]]
        %p179 = scmp.gt.s32.totalorder %s178, 0
        %s180 = scalar_select %p179, %s178, 0
        %p181 = scmp.lt.s32.totalorder %s180, 63
        %s182 = scalar_select %p181, %s180, 63
        %s183 = scalar_lea.vmem %s1, %s182
        %v184 = vld [vmem:[%s183] sm:$0x1]
        %185 = vst.msk [vmem:[%s132 + $0x4] sm:$0x1] %vm148, %v184
        %s186 = sadd.s32 %s140, 5
        %s187 = sld [smem:[#allocation3 + %s186]]
        %p188 = scmp.gt.s32.totalorder %s187, 0
        %s189 = scalar_select %p188, %s187, 0
        %p190 = scmp.lt.s32.totalorder %s189, 63
        %s191 = scalar_select %p190, %s189, 63
        %s192 = scalar_lea.vmem %s1, %s191
        %v193 = vld [vmem:[%s192] sm:$0x1]
        %194 = vst.msk [vmem:[%s132 + $0x5] sm:$0x1] %vm148, %v193
        %s195 = sadd.s32 %s140, 6
        %s196 = sld [smem:[#allocation3 + %s195]]
        %p197 = scmp.gt.s32.totalorder %s196, 0
        %s198 = scalar_select %p197, %s196, 0
        %p199 = scmp.lt.s32.totalorder %s198, 63
        %s200 = scalar_select %p199, %s198, 63
        %s201 = scalar_lea.vmem %s1, %s200
        %v202 = vld [vmem:[%s201] sm:$0x1]
        %203 = vst.msk [vmem:[%s132 + $0x6] sm:$0x1] %vm148, %v202
        %s204 = sadd.s32 %s140, 7
        %s205 = sld [smem:[#allocation3 + %s204]]
        %p206 = scmp.gt.s32.totalorder %s205, 0
        %s207 = scalar_select %p206, %s205, 0
        %p208 = scmp.lt.s32.totalorder %s207, 63
        %s209 = scalar_select %p208, %s207, 63
        %s210 = scalar_lea.vmem %s1, %s209
        %v211 = vld [vmem:[%s210] sm:$0x1]
        %212 = vst.msk [vmem:[%s132 + $0x7] sm:$0x1] %vm148, %v211
        %v213 = vld [vmem:[%s132] sm:$0xff]
        %v214 = vlaneseq
        %v215 = vshrl.u32 %v214, 7
        %v216 = vstv %s140
        %v217 = vadd.s32 %v216, %v215
        %vm218 = vcmp.lt.s32.totalorder %v217, 16
        %v219 = vsel %vm218, 1, 0
        %vm220 = vcmp.eq.s32.totalorder %v219, 1
        %v221 = vsel %vm220, %v213, 0.0
        %vm222 = vcmask 261120
        %v223 = vsel %vm222, %v221, 0.0
        %v224 = vrot.slane %v223, 4
        %v225 = vadd.f32 %v223, %v224
        %v226 = vrot.slane %v225, 2
        %v227 = vadd.f32 %v225, %v226
        %v228 = vrot.slane %v227, 1
        %v229 = vadd.f32 %v227, %v228
        %v230 = vmul.f32 %v221, %v221
        %v231 = vsel %vm222, %v230, 0.0
        %v232 = vrot.slane %v231, 4
        %v233 = vadd.f32 %v231, %v232
        %v234 = vrot.slane %v233, 2
        %v235 = vadd.f32 %v233, %v234
        %v236 = vrot.slane %v235, 1
        %v237 = vadd.f32 %v235, %v236
        %vm238 = vcmask 1040384
        %v239 = vsel %vm238, %v229, %v237
        %vm240 = vcmask 254976
        %241 = vst.msk [vmem:[%s139] sm:$0x3] %vm240, %v239
        %s242 = sand.u32 %s56, 1
        %s243 = scalar_lea.sflag [#allocation5], %s242
        %s244 = sand.u32 %s56, 1
        %s245 = smul.addr %s244, 8
        %s246 = scalar_lea.vmem [#allocation4], %s245
        %s247 = sand.u32 %s82, 1
        %s248 = scalar_lea.sflag [#allocation7], %s247
        %s249 = sand.u32 %s82, 1
        %s250 = smul.addr %s249, 2
        %s251 = scalar_lea.vmem [#allocation6], %s250
        // Predicated region
        $region25: #{tpu_custom_call.1} parent=23 // pred_check
          %p252 = pneg %p66
        $region26: #{tpu_custom_call.1} parent=23 // pred_check_branch
          %254 = sbr.rel (%p252) target = $region28
        $region27: #{tpu_custom_call.1} parent=23 // pred_region
          %s256 = ssub.s32 128, 128
          %257 = vsyncadd %s243, %s256
          %s258 = smul.addr %s27, 128
          %s259 = scalar_lea.hbm %s2, %s258
          %s261 = sshll.u32 %s246, 4
          %s262 = int_to_ptr.vmem [resolvable:$true] %s261
          %264 = dma.vmem_to_hbm [thread:$0]  %s262, 128, %s259, %s243
        $region28: #{tpu_custom_call.1} parent=23 // pred_fallthru
          _
        // Predicated region
        $region29: #{tpu_custom_call.1} parent=23 // pred_check
          %p265 = pneg %p92
        $region30: #{tpu_custom_call.1} parent=23 // pred_check_branch
          %267 = sbr.rel (%p265) target = $region32
        $region31: #{tpu_custom_call.1} parent=23 // pred_region
          %s269 = ssub.s32 32, 32
          %270 = vsyncadd %s248, %s269
          %s271 = smul.addr %s27, 32
          %s272 = scalar_lea.hbm %s3, %s271
          %s274 = sshll.u32 %s251, 4
          %s275 = int_to_ptr.vmem [resolvable:$true] %s274
          %277 = dma.vmem_to_hbm [thread:$0]  %s275, 32, %s272, %s248
        $region32: #{tpu_custom_call.1} parent=23 // pred_fallthru
          _
      $region24: #{tpu_custom_call.1} parent=5 // pred_fallthru
        _
      %p278 = scmp.le.s32.totalorder 2, %s22
      // Predicated region
      $region33: #{tpu_custom_call.1} parent=5 // pred_check
        %p279 = pneg %p278
      $region34: #{tpu_custom_call.1} parent=5 // pred_check_branch
        %281 = sbr.rel (%p279) target = $region36
      $region35: #{tpu_custom_call.1} parent=5 // pred_region
        %s282 = ssub.s32 %s22, 2
        // Predicated region
        $region37: #{tpu_custom_call.1} parent=35 // pred_check
          %p283 = pneg %p72
        $region38: #{tpu_custom_call.1} parent=35 // pred_check_branch
          %285 = sbr.rel (%p283) target = $region40
        $region39: #{tpu_custom_call.1} parent=35 // pred_region
          %s286 = sand.u32 %s57, 1
          %s287 = scalar_lea.sflag [#allocation5], %s286
          %s288 = sand.u32 %s57, 1
          %s289 = smul.addr %s288, 8
          %s290 = scalar_lea.vmem [#allocation4], %s289
          %291 = dma.done %s287, 128
        $region40: #{tpu_custom_call.1} parent=35 // pred_fallthru
          _
        // Predicated region
        $region41: #{tpu_custom_call.1} parent=35 // pred_check
          %p292 = pneg %p98
        $region42: #{tpu_custom_call.1} parent=35 // pred_check_branch
          %294 = sbr.rel (%p292) target = $region44
        $region43: #{tpu_custom_call.1} parent=35 // pred_region
          %s295 = sand.u32 %s83, 1
          %s296 = scalar_lea.sflag [#allocation7], %s295
          %s297 = sand.u32 %s83, 1
          %s298 = smul.addr %s297, 2
          %s299 = scalar_lea.vmem [#allocation6], %s298
          %300 = dma.done %s296, 32
        $region44: #{tpu_custom_call.1} parent=35 // pred_fallthru
          _
      $region36: #{tpu_custom_call.1} parent=5 // pred_fallthru
        _
    $region6: #{tpu_custom_call.1} parent=1 // loop_footer
      %s26 = sadd.s32 1, %s22
    $region7: #{tpu_custom_call.1} parent=1 // loop_footer_branch
      %21 = sbr.rel target = $region3
    $region8: #{tpu_custom_call.1} parent=1 // loop_exit
      _
    %301 = vsyncpa [#allocation5], 1
    %s302 = scalar_lea.sflag [#allocation5], 1
    %303 = vsyncpa %s302, 1
    %304 = vsyncpa [#allocation7], 1
    %s305 = scalar_lea.sflag [#allocation7], 1
    %306 = vsyncpa %s305, 1

</llo_original>
